<compile_context>
chip_gen: v6e
topology: v6e:2x2x1
jax: 0.10.0
libtpu: 0.0.40
codegen_flags: <defaults>
</compile_context>

<pallas_src>
import jax
import jax.numpy as jnp
from jax.experimental import pallas as pl
from jax.experimental.pallas import tpu as pltpu


def _self_attentive_sum_kernel(x_ref, wk_ref, wo_ref, o_ref):
    """One batch element per grid step.

    x_ref : VMEM (1, S, D)  input embeddings for this batch element
    wk_ref: VMEM (D, H)     key_maker.weight^T (resident across grid steps)
    wo_ref: VMEM (1, H)     key_output.weight  (resident across grid steps)
    o_ref : VMEM (1, 1, D)  pooled output row
    """
    x = x_ref[0].astype(jnp.float32)          # (S, D)
    wk = wk_ref[...].astype(jnp.float32)      # (D, H)
    wo = wo_ref[...].astype(jnp.float32)      # (1, H)

    # k_d = relu(x @ W_key^T)  -> (S, H)   (MXU, f32 accumulate)
    kd = jnp.dot(x, wk, preferred_element_type=jnp.float32)
    kd = jnp.maximum(kd, 0.0)

    # k = key_output(k_d) -> (S, 1).  The H->1 projection is a degenerate
    # matmul, so do it as a VPU broadcast-multiply + lane (XLU) reduction.
    k = jnp.sum(kd * wo, axis=-1, keepdims=True)            # (S, 1)

    # Masked softmax over the sequence axis (matches torch _masked_softmax:
    # max taken before masking, mask applied to the exponentials, +1e-20).
    mask = jnp.where(x[:, 0:1] != 0.0, 1.0, 0.0)             # (S, 1)
    k_max = jnp.max(k, axis=0, keepdims=True)                # (1, 1)
    k_exp = jnp.exp(k - k_max) * mask                        # (S, 1)
    denom = jnp.sum(k_exp, axis=0, keepdims=True) + 1e-20    # (1, 1)
    attn = k_exp / denom                                     # (S, 1)

    # Weighted sum over the sequence -> (1, D)
    pooled = jnp.sum(attn * x, axis=0, keepdims=True)
    o_ref[0] = pooled.astype(o_ref.dtype)


def self_attentive_sum(x, w_key, w_output=None):
    """Pallas implementation of SelfAttentiveSum.forward.

    x        : (B, S, D)  input_embed
    w_key    : (H, D)     key_maker.weight   (nn.Linear(D, H, bias=False))
    w_output : (1, H)     key_output.weight  (nn.Linear(H, 1, bias=False));
                          unused when H == 1 (module skips key_output then).
    returns  : (B, D)     attention-pooled embeddings
    """
    B, S, D = x.shape
    H, D_w = w_key.shape
    assert D_w == D, f"w_key shape {w_key.shape} incompatible with D={D}"

    # Tiny parameter prep (not the hot data path): pre-transpose W_key so the
    # kernel does a straight (S, D) @ (D, H) matmul with no in-kernel transpose.
    wk_t = jnp.asarray(w_key, jnp.float32).T                 # (D, H)
    if H == 1:
        # hidden_dim == 1: k = k_d directly; identity "output" weight.
        wo = jnp.ones((1, 1), dtype=jnp.float32)
    else:
        assert w_output is not None and w_output.shape == (1, H)
        wo = jnp.asarray(w_output, jnp.float32)              # (1, H)

    out = pl.pallas_call(
        _self_attentive_sum_kernel,
        out_shape=jax.ShapeDtypeStruct((B, 1, D), x.dtype),
        grid_spec=pl.GridSpec(
            grid=(B,),
            in_specs=[
                pl.BlockSpec((1, S, D), lambda b: (b, 0, 0)),  # one batch row
                pl.BlockSpec((D, H), lambda b: (0, 0)),        # W_key^T, resident
                pl.BlockSpec((1, H), lambda b: (0, 0)),        # W_out, resident
            ],
            out_specs=pl.BlockSpec((1, 1, D), lambda b: (b, 0, 0)),
        ),
        compiler_params=pltpu.CompilerParams(
            dimension_semantics=("parallel",),
        ),
    )(x, wk_t, wo)

    return out.reshape(B, D)


def _reference(x, w_key, w_output=None):
    """Plain-JAX reference mirroring the PyTorch forward (f32, highest precision)."""
    B, S, D = x.shape
    H = w_key.shape[0]
    hi = jax.lax.Precision.HIGHEST
    x32 = x.astype(jnp.float32)
    mask = (x32[:, :, 0] != 0.0).astype(jnp.float32)                    # (B, S)
    kd = jnp.maximum(
        jnp.einsum("bsd,hd->bsh", x32, w_key.astype(jnp.float32), precision=hi), 0.0)
    if H == 1:
        k = kd[:, :, 0]                                                 # (B, S)
    else:
        k = jnp.einsum("bsh,oh->bso", kd, w_output.astype(jnp.float32),
                       precision=hi)[:, :, 0]                           # (B, S)
    k_max = jnp.max(k, axis=1, keepdims=True)
    k_exp = jnp.exp(k - k_max) * mask
    attn = k_exp / (jnp.sum(k_exp, axis=1, keepdims=True) + 1e-20)      # (B, S)
    return jnp.sum(attn[:, :, None] * x32, axis=1).astype(x.dtype)      # (B, D)


if __name__ == "__main__":
    key = jax.random.PRNGKey(0)
    k1, k2, k3 = jax.random.split(key, 3)

    # Small shapes consistent with the module: batch=2, seq=8, output_dim=128, hidden=32.
    B, S, D, H = 2, 8, 128, 32
    x = jax.random.normal(k1, (B, S, D), dtype=jnp.float32)
    # Mark a few trailing positions of batch 0 as "padding" (feature 0 == 0)
    # so the masked-softmax path is actually exercised.
    x = x.at[0, 5:, 0].set(0.0)

    w_key = 0.1 * jax.random.normal(k2, (H, D), dtype=jnp.float32)   # key_maker.weight
    w_out = 0.1 * jax.random.normal(k3, (1, H), dtype=jnp.float32)   # key_output.weight

    out = jax.block_until_ready(self_attentive_sum(x, w_key, w_out))
    ref = _reference(x, w_key, w_out)

    assert out.shape == (B, D)
    assert jnp.allclose(out, ref, atol=2e-3, rtol=2e-3), float(jnp.max(jnp.abs(out - ref)))

    print("KERNEL_OK")
</pallas_src>

<mosaic_0001>
module attributes {stable_mosaic.version = 11 : i64} {
  func.func @_self_attentive_sum_kernel(%arg0: i32, %arg1: memref<1x8x128xf32, #tpu.memory_space<vmem>>, %arg2: memref<128x32xf32, #tpu.memory_space<vmem>>, %arg3: memref<1x32xf32, #tpu.memory_space<vmem>>, %arg4: memref<1x1x128xf32, #tpu.memory_space<vmem>>) attributes {dimension_semantics = [#tpu.dimension_semantics<parallel>], iteration_bounds = array<i64: 2>, scalar_prefetch = 0 : i64, scratch_operands = 0 : i64, tpu.core_type = #tpu.core_type<tc>, window_params = [{transform_indices = @transform_0, window_bounds = array<i64: 1, 8, 128>}, {pipeline_mode = #tpu.pipeline_mode<synchronous>, transform_indices = @transform_1, window_bounds = array<i64: 128, 32>}, {pipeline_mode = #tpu.pipeline_mode<synchronous>, transform_indices = @transform_2, window_bounds = array<i64: 1, 32>}, {transform_indices = @transform_3, window_bounds = array<i64: 1, 1, 128>}]} {
    %c0 = arith.constant 0 : index
    %c0_0 = arith.constant 0 : index
    %c0_1 = arith.constant 0 : index
    %0 = vector.load %arg1[%c0, %c0_0, %c0_1] : memref<1x8x128xf32, #tpu.memory_space<vmem>>, vector<1x8x128xf32>
    %1 = vector.shape_cast %0 : vector<1x8x128xf32> to vector<8x128xf32>
    %c0_2 = arith.constant 0 : index
    %c0_3 = arith.constant 0 : index
    %2 = vector.load %arg2[%c0_2, %c0_3] : memref<128x32xf32, #tpu.memory_space<vmem>>, vector<128x32xf32>
    %c0_4 = arith.constant 0 : index
    %c0_5 = arith.constant 0 : index
    %3 = vector.load %arg3[%c0_4, %c0_5] : memref<1x32xf32, #tpu.memory_space<vmem>>, vector<1x32xf32>
    %cst = arith.constant dense<0.000000e+00> : vector<8x32xf32>
    %4 = tpu.matmul %1, %2, %cst {dimension_numbers = #tpu.dot_dimension_numbers<[1], [0], [0], [1], [0, 0, 1, 1], [], []>} : vector<8x128xf32>, vector<128x32xf32>, vector<8x32xf32> -> vector<8x32xf32>
    %cst_6 = arith.constant 0.000000e+00 : f32
    %5 = vector.broadcast %cst_6 : f32 to vector<8x32xf32>
    %6 = arith.maximumf %4, %5 : vector<8x32xf32>
    %7 = vector.broadcast %3 : vector<1x32xf32> to vector<8x32xf32>
    %8 = arith.mulf %6, %7 : vector<8x32xf32>
    %cst_7 = arith.constant dense<0.000000e+00> : vector<8xf32>
    %9 = vector.multi_reduction <add>, %8, %cst_7 [1] : vector<8x32xf32> to vector<8xf32>
    %10 = vector.shape_cast %9 : vector<8xf32> to vector<8x1xf32>
    %11 = vector.extract_strided_slice %1 {offsets = [0, 0], sizes = [8, 1], strides = [1, 1]} : vector<8x128xf32> to vector<8x1xf32>
    %cst_8 = arith.constant 0.000000e+00 : f32
    %12 = vector.broadcast %cst_8 : f32 to vector<8x1xf32>
    %13 = arith.cmpf one, %11, %12 : vector<8x1xf32>
    %cst_9 = arith.constant 1.000000e+00 : f32
    %cst_10 = arith.constant 0.000000e+00 : f32
    %14 = vector.broadcast %cst_9 : f32 to vector<8x1xf32>
    %15 = vector.broadcast %cst_10 : f32 to vector<8x1xf32>
    %16 = arith.select %13, %14, %15 : vector<8x1xi1>, vector<8x1xf32>
    %cst_11 = arith.constant dense<0xFF800000> : vector<1xf32>
    %17 = vector.multi_reduction <maximumf>, %10, %cst_11 [0] : vector<8x1xf32> to vector<1xf32>
    %18 = vector.shape_cast %17 : vector<1xf32> to vector<1x1xf32>
    %19 = vector.broadcast %18 : vector<1x1xf32> to vector<8x1xf32>
    %20 = arith.subf %10, %19 : vector<8x1xf32>
    %21 = math.exp %20 : vector<8x1xf32>
    %22 = arith.mulf %21, %16 : vector<8x1xf32>
    %cst_12 = arith.constant dense<0.000000e+00> : vector<1xf32>
    %23 = vector.multi_reduction <add>, %22, %cst_12 [0] : vector<8x1xf32> to vector<1xf32>
    %24 = vector.shape_cast %23 : vector<1xf32> to vector<1x1xf32>
    %cst_13 = arith.constant 9.99999968E-21 : f32
    %25 = vector.broadcast %cst_13 : f32 to vector<1x1xf32>
    %26 = arith.addf %24, %25 : vector<1x1xf32>
    %27 = vector.broadcast %26 : vector<1x1xf32> to vector<8x1xf32>
    %28 = arith.divf %22, %27 : vector<8x1xf32>
    %29 = vector.broadcast %28 : vector<8x1xf32> to vector<8x128xf32>
    %30 = arith.mulf %29, %1 : vector<8x128xf32>
    %cst_14 = arith.constant dense<0.000000e+00> : vector<128xf32>
    %31 = vector.multi_reduction <add>, %30, %cst_14 [0] : vector<8x128xf32> to vector<128xf32>
    %32 = vector.shape_cast %31 : vector<128xf32> to vector<1x128xf32>
    %c0_15 = arith.constant 0 : index
    %c0_16 = arith.constant 0 : index
    %c0_17 = arith.constant 0 : index
    %33 = vector.load %arg4[%c0_15, %c0_16, %c0_17] : memref<1x1x128xf32, #tpu.memory_space<vmem>>, vector<1x1x128xf32>
    %34 = vector.shape_cast %33 : vector<1x1x128xf32> to vector<1x128xf32>
    %35 = vector.shape_cast %32 : vector<1x128xf32> to vector<1x1x128xf32>
    tpu.vector_store %arg4[%c0_15, %c0_16, %c0_17], %35 {strides = array<i32>} : memref<1x1x128xf32, #tpu.memory_space<vmem>>, vector<1x1x128xf32>,
    return
  }
  func.func @transform_0(%arg0: i32) -> (i32, i32, i32) {
    %c0_i32 = arith.constant 0 : i32
    %c0_i32_0 = arith.constant 0 : i32
    %c0_i32_1 = arith.constant 0 : i32
    return %arg0, %c0_i32, %c0_i32_0 : i32, i32, i32
  }
  func.func @transform_1(%arg0: i32) -> (i32, i32) {
    %c0_i32 = arith.constant 0 : i32
    %c0_i32_0 = arith.constant 0 : i32
    %c0_i32_1 = arith.constant 0 : i32
    return %c0_i32, %c0_i32_0 : i32, i32
  }
  func.func @transform_2(%arg0: i32) -> (i32, i32) {
    %c0_i32 = arith.constant 0 : i32
    %c0_i32_0 = arith.constant 0 : i32
    %c0_i32_1 = arith.constant 0 : i32
    return %c0_i32, %c0_i32_0 : i32, i32
  }
  func.func @transform_3(%arg0: i32) -> (i32, i32, i32) {
    %c0_i32 = arith.constant 0 : i32
    %c0_i32_0 = arith.constant 0 : i32
    %c0_i32_1 = arith.constant 0 : i32
    return %arg0, %c0_i32, %c0_i32_0 : i32, i32, i32
  }
}

</mosaic_0001>

<llo_original>
// kernel: tpu_custom_call.1
$region0: #{tpu_custom_call.1}
  #allocation0 [shape = 'u32[]', space=smem, size = 0x4, offset = 0x4, fixed_abs, tag = 'smem constant byte address 0x4 - core index']
  #allocation1 [shape = 'u32[144,128]{1,0:T(1,128)}', space=vmem, size = 0x12000, scoped, tag = 'internal scratch']
  %s0 = inlined_call_operand.vmem [shape: f32[2,8,128], index: 0, kind: input, shape index: {}]
  %s1 = inlined_call_operand.vmem [shape: f32[128,32], index: 1, kind: input, shape index: {}]
  %s2 = inlined_call_operand.vmem [shape: f32[1,32], index: 2, kind: input, shape index: {}]
  %s3 = inlined_call_operand.hbm [shape: f32[2,1,128], index: 3, kind: output, shape index: {}]
  %s4 = sld [smem:[#allocation0]]
  $region45: #{tpu_custom_call.1} parent=0
    _
  %s6 = ssub.s32 1, %s4
  %s7 = scalar_select 0, %s6, %s4
  $region1: #{tpu_custom_call.1} parent=0
    #allocation2 [shape = 'u8[1024]{0}', space=vmem, size = 0x400, scoped, tag = 'output window, operand 0']
    #allocation3 [shape = 's32[2]{0}', space=sflag, size = 0x8, scoped, tag = 'scoped memory for tpu_custom_call.1']
    %8 = vsyncpa [#allocation3], 0
    %s9 = scalar_lea.sflag [#allocation3], 1
    %10 = vsyncpa %s9, 0
    loop: start=0, step=1, limit=4
    $region2: #{tpu_custom_call.1} parent=1 // loop_pre_header
      _
    $region3: #{tpu_custom_call.1} parent=1 // loop_header
      %s12 = sphi 0, %s16
      %p13 = scmp.ge.s32.totalorder %s12, 4
      %s22 = sphi 0, %s24
      %s25 = sphi 0, %s22
      %s26 = sphi 0, %s25
      %s42 = sphi 0, %s26
      %s46 = sphi 0, %s46
      %s48 = sphi 0, %s46
      %s49 = sphi 0, %s48
      %s63 = sphi 0, %s49
      %s67 = sphi 0, %s67
      %s69 = sphi 0, %s67
      %s70 = sphi 0, %s69
      %s84 = sphi 0, %s70
      %s90 = sphi 0, %s92
      %s93 = sphi 0, %s90
      %s94 = sphi 0, %s93
      %s110 = sphi 0, %s94
    $region4: #{tpu_custom_call.1} parent=1 // loop_header_branch
      %15 = sbr.rel (%p13) target = $region8
    $region5: #{tpu_custom_call.1} parent=1 // loop_body
      %s17 = ssub.s32 %s12, 1
      %s18 = ssub.s32 %s12, 2
      %s19 = sadd.s32 %s12, 1
      %s20 = ssub.s32 %s12, %s19
      %p21 = scmp.eq.s32.totalorder %s20, 0
      %s23 = sadd.s32 %s22, 1
      %s24 = scalar_select %p21, %s22, %s23
      %p27 = pneg %p21
      %p28 = scmp.eq.s32.totalorder %s12, 1
      %p29 = por %p27, %p28
      %p30 = scmp.ne.s32.totalorder %s22, %s25
      %p31 = scmp.eq.s32.totalorder %s12, 0
      %p32 = por %p30, %p31
      %p33 = scmp.ne.s32.totalorder %s22, %s25
      %p34 = scmp.eq.s32.totalorder %s17, 1
      %p35 = por %p33, %p34
      %p36 = scmp.ne.s32.totalorder %s25, %s26
      %p37 = scmp.eq.s32.totalorder %s17, 0
      %p38 = por %p36, %p37
      %p39 = scmp.ne.s32.totalorder %s25, %s26
      %p40 = scmp.eq.s32.totalorder %s18, 1
      %p41 = por %p39, %p40
      %p43 = scmp.ne.s32.totalorder %s26, %s42
      %p44 = scmp.eq.s32.totalorder %s18, 0
      %p45 = por %p43, %p44
      %s47 = sadd.s32 %s46, 1
      %p50 = scmp.eq.s32.totalorder %s12, 1
      %p51 = scmp.ne.s32.totalorder %s46, %s48
      %p52 = scmp.eq.s32.totalorder %s12, 0
      %p53 = por %p51, %p52
      %p54 = scmp.ne.s32.totalorder %s46, %s48
      %p55 = scmp.eq.s32.totalorder %s17, 1
      %p56 = por %p54, %p55
      %p57 = scmp.ne.s32.totalorder %s48, %s49
      %p58 = scmp.eq.s32.totalorder %s17, 0
      %p59 = por %p57, %p58
      %p60 = scmp.ne.s32.totalorder %s48, %s49
      %p61 = scmp.eq.s32.totalorder %s18, 1
      %p62 = por %p60, %p61
      %p64 = scmp.ne.s32.totalorder %s49, %s63
      %p65 = scmp.eq.s32.totalorder %s18, 0
      %p66 = por %p64, %p65
      %s68 = sadd.s32 %s67, 1
      %p71 = scmp.eq.s32.totalorder %s12, 1
      %p72 = scmp.ne.s32.totalorder %s67, %s69
      %p73 = scmp.eq.s32.totalorder %s12, 0
      %p74 = por %p72, %p73
      %p75 = scmp.ne.s32.totalorder %s67, %s69
      %p76 = scmp.eq.s32.totalorder %s17, 1
      %p77 = por %p75, %p76
      %p78 = scmp.ne.s32.totalorder %s69, %s70
      %p79 = scmp.eq.s32.totalorder %s17, 0
      %p80 = por %p78, %p79
      %p81 = scmp.ne.s32.totalorder %s69, %s70
      %p82 = scmp.eq.s32.totalorder %s18, 1
      %p83 = por %p81, %p82
      %p85 = scmp.ne.s32.totalorder %s70, %s84
      %p86 = scmp.eq.s32.totalorder %s18, 0
      %p87 = por %p85, %p86
      %s88 = ssub.s32 %s12, %s19
      %p89 = scmp.eq.s32.totalorder %s88, 0
      %s91 = sadd.s32 %s90, 1
      %s92 = scalar_select %p89, %s90, %s91
      %p95 = pneg %p89
      %p96 = scmp.eq.s32.totalorder %s12, 1
      %p97 = por %p95, %p96
      %p98 = scmp.ne.s32.totalorder %s90, %s93
      %p99 = scmp.eq.s32.totalorder %s12, 0
      %p100 = por %p98, %p99
      %p101 = scmp.ne.s32.totalorder %s90, %s93
      %p102 = scmp.eq.s32.totalorder %s17, 1
      %p103 = por %p101, %p102
      %p104 = scmp.ne.s32.totalorder %s93, %s94
      %p105 = scmp.eq.s32.totalorder %s17, 0
      %p106 = por %p104, %p105
      %p107 = scmp.ne.s32.totalorder %s93, %s94
      %p108 = scmp.eq.s32.totalorder %s18, 1
      %p109 = por %p107, %p108
      %p111 = scmp.ne.s32.totalorder %s94, %s110
      %p112 = scmp.eq.s32.totalorder %s18, 0
      %p113 = por %p111, %p112
      %p114 = scmp.le.s32.totalorder 1, %s12
      %p115 = scmp.lt.s32.totalorder %s12, 3
      %p116 = pnand %p114, %p115
      %p117 = pneg %p116
      // Predicated region
      $region9: #{tpu_custom_call.1} parent=5 // pred_check
        _
      $region10: #{tpu_custom_call.1} parent=5 // pred_check_branch
        %119 = sbr.rel (%p116) target = $region12
      $region11: #{tpu_custom_call.1} parent=5 // pred_region
        %s120 = ssub.s32 %s12, 1
        // Predicated region
        $region13: #{tpu_custom_call.1} parent=11 // pred_check
          %p121 = pneg %p59
        $region14: #{tpu_custom_call.1} parent=11 // pred_check_branch
          %123 = sbr.rel (%p121) target = $region16
        $region15: #{tpu_custom_call.1} parent=11 // pred_region
          _
        $region16: #{tpu_custom_call.1} parent=11 // pred_fallthru
          _
        // Predicated region
        $region17: #{tpu_custom_call.1} parent=11 // pred_check
          %p124 = pneg %p80
        $region18: #{tpu_custom_call.1} parent=11 // pred_check_branch
          %126 = sbr.rel (%p124) target = $region20
        $region19: #{tpu_custom_call.1} parent=11 // pred_region
          _
        $region20: #{tpu_custom_call.1} parent=11 // pred_fallthru
          _
      $region12: #{tpu_custom_call.1} parent=5 // pred_fallthru
        _
      %p127 = scmp.lt.s32.totalorder %s12, 2
      // Predicated region
      $region21: #{tpu_custom_call.1} parent=5 // pred_check
        %p128 = pneg %p127
      $region22: #{tpu_custom_call.1} parent=5 // pred_check_branch
        %130 = sbr.rel (%p128) target = $region24
      $region23: #{tpu_custom_call.1} parent=5 // pred_region
        // Predicated region
        $region25: #{tpu_custom_call.1} parent=23 // pred_check
          %p131 = pneg %p32
        $region26: #{tpu_custom_call.1} parent=23 // pred_check_branch
          %133 = sbr.rel (%p131) target = $region28
        $region27: #{tpu_custom_call.1} parent=23 // pred_region
          %p134 = scmp.lt.s32.totalorder %s12, 1
          %s135 = scalar_select %p134, %s12, 1
          %s136 = smul.addr %s135, 8
          %s137 = scalar_lea.vmem %s0, %s136
        $region28: #{tpu_custom_call.1} parent=23 // pred_fallthru
          _
      $region24: #{tpu_custom_call.1} parent=5 // pred_fallthru
        _
      %p138 = scmp.le.s32.totalorder 1, %s12
      %p139 = scmp.lt.s32.totalorder %s12, 3
      %p140 = pnand %p138, %p139
      %p141 = pneg %p140
      // Predicated region
      $region29: #{tpu_custom_call.1} parent=5 // pred_check
        _
      $region30: #{tpu_custom_call.1} parent=5 // pred_check_branch
        %143 = sbr.rel (%p140) target = $region32
      $region31: #{tpu_custom_call.1} parent=5 // pred_region
        %s144 = ssub.s32 %s12, 1
        %p145 = scmp.lt.s32.totalorder %s17, 1
        %s146 = scalar_select %p145, %s17, 1
        %s147 = smul.addr %s146, 8
        %s148 = scalar_lea.vmem %s0, %s147
        %p149 = pneg %p38
        %p150 = pneg %p35
        %p151 = pneg %p59
        %p152 = pneg %p56
        %p153 = pneg %p80
        %p154 = pneg %p77
        %p155 = pneg %p106
        %p156 = pneg %p103
        %s157 = sand.u32 %s93, 1
        %s158 = scalar_lea.sflag [#allocation3], %s157
        %s159 = sand.u32 %s93, 1
        %s160 = scalar_lea.vmem [#allocation2], %s159
        %p161 = scmp.lt.s32.totalorder %s17, 1
        %s162 = scalar_select %p161, %s17, 1
        %s163 = smul.addr %s162, 8
        %s164 = scalar_lea.vmem %s0, %s163
        %v165 = vld [vmem:[%s164] sm:$0xff]
        %v166 = vld [vmem:[%s1] sm:$0xff]
        %v167 = vld [vmem:[%s1 + $0x8] sm:$0xff]
        %v168 = vld [vmem:[%s1 + $0x10] sm:$0xff]
        %v169 = vld [vmem:[%s1 + $0x18] sm:$0xff]
        %v170 = vld [vmem:[%s1 + $0x20] sm:$0xff]
        %v171 = vld [vmem:[%s1 + $0x28] sm:$0xff]
        %v172 = vld [vmem:[%s1 + $0x30] sm:$0xff]
        %v173 = vld [vmem:[%s1 + $0x38] sm:$0xff]
        %v174 = vld [vmem:[%s1 + $0x40] sm:$0xff]
        %v175 = vld [vmem:[%s1 + $0x48] sm:$0xff]
        %v176 = vld [vmem:[%s1 + $0x50] sm:$0xff]
        %v177 = vld [vmem:[%s1 + $0x58] sm:$0xff]
        %v178 = vld [vmem:[%s1 + $0x60] sm:$0xff]
        %v179 = vld [vmem:[%s1 + $0x68] sm:$0xff]
        %v180 = vld [vmem:[%s1 + $0x70] sm:$0xff]
        %v181 = vld [vmem:[%s1 + $0x78] sm:$0xff]
        %v182 = vld [vmem:[%s2] sm:$0x1]
        %183 = vmatprep.subr.mxu0 0.0
        %184 = vmatpush1.msra.mxu0 %v181
        %185 = vmatprep.subr.mxu0 0.0
        %186 = vmatpush1.msra.mxu0 %v180
        %187 = vmatprep.subr.mxu0 0.0
        %188 = vmatpush1.msra.mxu0 %v179
        %189 = vmatprep.subr.mxu0 0.0
        %190 = vmatpush1.msra.mxu0 %v178
        %191 = vmatprep.subr.mxu0 0.0
        %192 = vmatpush1.msra.mxu0 %v177
        %193 = vmatprep.subr.mxu0 0.0
        %194 = vmatpush1.msra.mxu0 %v176
        %195 = vmatprep.subr.mxu0 0.0
        %196 = vmatpush1.msra.mxu0 %v175
        %197 = vmatprep.subr.mxu0 0.0
        %198 = vmatpush1.msra.mxu0 %v174
        %199 = vmatprep.subr.mxu0 0.0
        %200 = vmatpush1.msra.mxu0 %v173
        %201 = vmatprep.subr.mxu0 0.0
        %202 = vmatpush1.msra.mxu0 %v172
        %203 = vmatprep.subr.mxu0 0.0
        %204 = vmatpush1.msra.mxu0 %v171
        %205 = vmatprep.subr.mxu0 0.0
        %206 = vmatpush1.msra.mxu0 %v170
        %207 = vmatprep.subr.mxu0 0.0
        %208 = vmatpush1.msra.mxu0 %v169
        %209 = vmatprep.subr.mxu0 0.0
        %210 = vmatpush1.msra.mxu0 %v168
        %211 = vmatprep.subr.mxu0 0.0
        %212 = vmatpush1.msra.mxu0 %v167
        %213 = vmatprep.subr.mxu0 0.0
        %214 = vmatpush1.msra.mxu0 %v166
        %215 = vmatprep.subr.mxu0 0.0
        %216 = vmatpush2.msra.mxu0 0.0
        %217 = vmatprep.subr.mxu0 0.0
        %218 = vmatpush2.msra.mxu0 0.0
        %219 = vmatprep.subr.mxu0 0.0
        %220 = vmatpush2.msra.mxu0 0.0
        %221 = vmatprep.subr.mxu0 0.0
        %222 = vmatpush2.msra.mxu0 0.0
        %223 = vmatprep.subr.mxu0 0.0
        %224 = vmatpush2.msra.mxu0 0.0
        %225 = vmatprep.subr.mxu0 0.0
        %226 = vmatpush2.msra.mxu0 0.0
        %227 = vmatprep.subr.mxu0 0.0
        %228 = vmatpush2.msra.mxu0 0.0
        %229 = vmatprep.subr.mxu0 0.0
        %230 = vmatpush2.msra.mxu0 0.0
        %231 = vmatprep.subr.mxu0 0.0
        %232 = vmatpush2.msra.mxu0 0.0
        %233 = vmatprep.subr.mxu0 0.0
        %234 = vmatpush2.msra.mxu0 0.0
        %235 = vmatprep.subr.mxu0 0.0
        %236 = vmatpush2.msra.mxu0 0.0
        %237 = vmatprep.subr.mxu0 0.0
        %238 = vmatpush2.msra.mxu0 0.0
        %239 = vmatprep.subr.mxu0 0.0
        %240 = vmatpush2.msra.mxu0 0.0
        %241 = vmatprep.subr.mxu0 0.0
        %242 = vmatpush2.msra.mxu0 0.0
        %243 = vmatprep.subr.mxu0 0.0
        %244 = vmatpush2.msra.mxu0 0.0
        %245 = vmatprep.subr.mxu0 0.0
        %246 = vmatpush2.msra.mxu0 0.0
        %247 = vmatprep.mubr.f32.mxu0 0.0
        %248 = vmatmul.mubr.f32.gmra.mxu0 %v165
        %v249 = vpop.f32.mrf.mxu0
        %v250 = vadd.f32 0.0, %v249
        %v251 = vpop.f32.mrf.mxu0
        %252 = vdwg.mxu0
        %v253 = vmax.f32 %v250, 0.0
        %v255 = vlaneseq
        %v256 = vshrl.u32 %v255, 7
        %v257 = vsub.s32 0, %v256
        %v258 = vrot.slane %v182, %v257
        %v260 = vmul.f32 %v253, %v258
        %vm261 = vcmask 261120
        %v262 = vsel %vm261, %v260, 0.0
        %263 = vadd.xlane.f32.xlu0 %v262
        %v264 = vpop.xlane.xlu0 %263
        %vm265 = vcmp.ne.f32.partialorder %v165, 0.0
        %v266 = vsel %vm265, 1.0, 0.0
        %v267 = vrot.slane %v264, 4
        %v268 = vmax.f32 %v264, %v267
        %v269 = vrot.slane %v268, 2
        %v270 = vmax.f32 %v268, %v269
        %v271 = vrot.slane %v270, 1
        %v272 = vmax.f32 %v270, %v271
        %v273 = vsub.f32 %v264, %v272
        %v274 = vmul.f32 %v273, 1.442695
        %v275 = vpow.pop %v274
        %v276 = vmul.f32 %v275, %v266
        %vm277 = vcmask 7168
        %v278 = vsel %vm277, %v276, 0.0
        %v279 = vrot.slane %v278, 4
        %v280 = vadd.f32 %v278, %v279
        %v281 = vrot.slane %v280, 2
        %v282 = vadd.f32 %v280, %v281
        %v283 = vrot.slane %v282, 1
        %v284 = vadd.f32 %v282, %v283
        %v285 = vadd.f32 %v284, 1e-20
        %v286 = vrcp.pop %v285
        %v287 = vmul.f32 %v276, %v286
        %289 = vset.pattern.permute.xlu0 0
        %290 = vperm.xlu0 %289, %v287
        %v291 = vpop.permute.xlu0 %290
        %v293 = vmul.f32 %v291, %v165
        %v294 = vrot.slane %v293, 4
        %v295 = vadd.f32 %v293, %v294
        %v296 = vrot.slane %v295, 2
        %v297 = vadd.f32 %v295, %v296
        %v298 = vrot.slane %v297, 1
        %v299 = vadd.f32 %v297, %v298
        %300 = vst [vmem:[%s160] sm:$0x1] %v299
        %s301 = sand.u32 %s93, 1
        %s302 = scalar_lea.sflag [#allocation3], %s301
        %s303 = sand.u32 %s93, 1
        %s304 = scalar_lea.vmem [#allocation2], %s303
        // Predicated region
        $region33: #{tpu_custom_call.1} parent=31 // pred_check
          %p305 = pneg %p103
        $region34: #{tpu_custom_call.1} parent=31 // pred_check_branch
          %307 = sbr.rel (%p305) target = $region36
        $region35: #{tpu_custom_call.1} parent=31 // pred_region
          %s309 = ssub.s32 16, 16
          %310 = vsyncadd %s302, %s309
          %s311 = smul.addr %s17, 16
          %s312 = scalar_lea.hbm %s3, %s311
          %s314 = sshll.u32 %s304, 4
          %s315 = int_to_ptr.vmem [resolvable:$true] %s314
          %317 = dma.vmem_to_hbm [thread:$0]  %s315, 16, %s312, %s302
        $region36: #{tpu_custom_call.1} parent=31 // pred_fallthru
          _
      $region32: #{tpu_custom_call.1} parent=5 // pred_fallthru
        _
      %p318 = scmp.le.s32.totalorder 2, %s12
      // Predicated region
      $region37: #{tpu_custom_call.1} parent=5 // pred_check
        %p319 = pneg %p318
      $region38: #{tpu_custom_call.1} parent=5 // pred_check_branch
        %321 = sbr.rel (%p319) target = $region40
      $region39: #{tpu_custom_call.1} parent=5 // pred_region
        %s322 = ssub.s32 %s12, 2
        // Predicated region
        $region41: #{tpu_custom_call.1} parent=39 // pred_check
          %p323 = pneg %p109
        $region42: #{tpu_custom_call.1} parent=39 // pred_check_branch
          %325 = sbr.rel (%p323) target = $region44
        $region43: #{tpu_custom_call.1} parent=39 // pred_region
          %s326 = sand.u32 %s94, 1
          %s327 = scalar_lea.sflag [#allocation3], %s326
          %s328 = sand.u32 %s94, 1
          %s329 = scalar_lea.vmem [#allocation2], %s328
          %330 = dma.done %s327, 16
        $region44: #{tpu_custom_call.1} parent=39 // pred_fallthru
          _
      $region40: #{tpu_custom_call.1} parent=5 // pred_fallthru
        _
    $region6: #{tpu_custom_call.1} parent=1 // loop_footer
      %s16 = sadd.s32 1, %s12
    $region7: #{tpu_custom_call.1} parent=1 // loop_footer_branch
      %11 = sbr.rel target = $region3
    $region8: #{tpu_custom_call.1} parent=1 // loop_exit
      _
    %331 = vsyncpa [#allocation3], 1
    %s332 = scalar_lea.sflag [#allocation3], 1
    %333 = vsyncpa %s332, 1

</llo_original>
